<compile_context>
chip_gen: v7x
topology: tpu7x:2x2x1
jax: 0.10.0
libtpu: 0.0.40
codegen_flags: <defaults>
</compile_context>

<pallas_src>
import math
import functools

import jax
import jax.numpy as jnp
from jax import lax
from jax.experimental import pallas as pl
from jax.experimental.pallas import tpu as pltpu


# ----------------------------------------------------------------------------
# Pallas kernels
# ----------------------------------------------------------------------------
def _pe_add_kernel(x_ref, pe_ref, o_ref):
    # x_ref: (TS, B, D), pe_ref: (TS, 1, D) -> broadcast over the batch axis.
    o_ref[...] = x_ref[...] + pe_ref[...]


def _lsr32(v, k):
    """Logical right shift of an int32 value by static k (arith shift + mask)."""
    mask = jnp.int32((1 << (32 - k)) - 1)
    return (v >> k) & mask


def _pe_add_dropout_kernel(seed_ref, x_ref, pe_ref, o_ref, *,
                           block_rows, batch, d_model, threshold_i32, scale):
    # Training path: add positional encoding then inverted dropout.
    # Random bits come from a counter-based integer hash (lowbias32) of the
    # global element index mixed with the seed, so the mask is identical for
    # any tile size and lowers on both Mosaic and the interpret fallback.
    y = x_ref[...] + pe_ref[...]                       # stays in x.dtype
    shape = y.shape                                    # (TS, B, D)

    s0 = pl.program_id(0) * block_rows
    s_idx = lax.broadcasted_iota(jnp.int32, shape, 0) + s0
    b_idx = lax.broadcasted_iota(jnp.int32, shape, 1)
    d_idx = lax.broadcasted_iota(jnp.int32, shape, 2)
    idx = (s_idx * jnp.int32(batch) + b_idx) * jnp.int32(d_model) + d_idx

    h = idx ^ (seed_ref[0] * jnp.int32(-1640531527))   # 0x9E3779B9 (wraps)
    h = h ^ _lsr32(h, 16)
    h = h * jnp.int32(0x7FEB352D)
    h = h ^ _lsr32(h, 15)
    h = h * jnp.int32(-2073254261)                     # 0x846CA68B
    h = h ^ _lsr32(h, 16)

    # keep iff uniform-32-bit < (1-p)*2^32, implemented as a signed compare.
    keep = h < jnp.int32(threshold_i32)
    scale_v = jnp.asarray(scale, dtype=y.dtype)
    o_ref[...] = jnp.where(keep, y * scale_v, jnp.zeros_like(y))


# ----------------------------------------------------------------------------
# Parameter setup (the registered buffer `pe`) — plain JAX glue.
# Build it once in the model dtype so the forward pass never re-casts it.
# ----------------------------------------------------------------------------
def make_positional_encoding_table(d_model: int, max_len: int = 5000,
                                   dtype=jnp.float32) -> jnp.ndarray:
    position = jnp.arange(max_len, dtype=jnp.float32)[:, None]            # (max_len, 1)
    div_term = jnp.exp(
        jnp.arange(0, d_model, 2, dtype=jnp.float32) * (-math.log(10000.0) / d_model)
    )                                                                      # (d_model/2,)
    pe = jnp.zeros((max_len, d_model), dtype=jnp.float32)
    pe = pe.at[:, 0::2].set(jnp.sin(position * div_term))
    pe = pe.at[:, 1::2].set(jnp.cos(position * div_term))
    return pe[:, None, :].astype(dtype)                                    # (max_len, 1, d_model)


# ----------------------------------------------------------------------------
# VMEM-aware tile-size selection.
# ----------------------------------------------------------------------------
def _sublane_tile(itemsize: int) -> int:
    return {4: 8, 2: 16, 1: 32}.get(int(itemsize), 8)


def _vmem_params():
    """(tile budget, vmem_limit_bytes) derived from the chip's VMEM capacity."""
    cap = 64 << 20                               # conservative fallback (v7x per-TC)
    try:
        info = pltpu.get_tpu_info()
        cap = int(getattr(info, "vmem_capacity_bytes", cap))
    except Exception:
        pass
    limit = min(cap // 2, 64 << 20)              # v7x: 32 MiB, v5e/v6e: 64 MiB
    budget = (limit * 3) // 4                    # v7x: 24 MiB, v5e/v6e: 48 MiB
    return budget, limit


def _pick_block_rows(S, B, D, itemsize, *, training, budget):
    sub_t = _sublane_tile(itemsize)
    sub = ((B + sub_t - 1) // sub_t) * sub_t     # padded sublanes of a (B, D) slab
    lane = ((D + 127) // 128) * 128              # padded lanes
    # per sequence row: double-buffered x-in + out blocks, plus the pe block
    # (its size-1 middle dim pads to a full sublane tile).
    per_row = (2 + 2) * sub * lane * itemsize + 2 * sub_t * lane * itemsize
    if training:
        # int32 index/hash temporaries + the y intermediate (rough accounting)
        per_row += sub * lane * (2 * 4 + itemsize)
    ts = max(1, budget // per_row)
    if ts >= S:
        # ensure >= 2 grid steps for non-tiny S so a "parallel" S axis has
        # blocks to shard across both v7x TensorCores (free on v5e/v6e).
        ts = S if S < 16 else -(-S // 2)
    else:
        if ts > 8:
            ts = (ts // 8) * 8
    return max(1, min(ts, S))


# ----------------------------------------------------------------------------
# Forward wrapper
# ----------------------------------------------------------------------------
def positional_encoding_forward(x, pe, *, p: float = 0.1,
                                training: bool = False, seed: int = 0,
                                block_rows=None):
    """x: [seq_len, batch, d_model]; pe: [max_len, 1, d_model] (PyTorch buffer layout).

    Use a distinct `seed` per call / per layer during training to decorrelate masks.
    """
    S, B, D = x.shape
    if pe.dtype != x.dtype:
        # Fallback only; build the table in the model dtype to avoid this cast.
        pe = pe.astype(x.dtype)

    do_dropout = bool(training) and float(p) > 0.0
    budget, vmem_limit = _vmem_params()

    if block_rows is None:
        block_rows = _pick_block_rows(S, B, D, jnp.dtype(x.dtype).itemsize,
                                      training=do_dropout, budget=budget)
    TS = max(1, min(int(block_rows), S))
    grid = (pl.cdiv(S, TS),)

    x_spec = pl.BlockSpec((TS, B, D), lambda i: (i, 0, 0))
    pe_spec = pl.BlockSpec((TS, 1, D), lambda i: (i, 0, 0))   # only first ceil(S/TS) blocks DMA'd
    out_spec = pl.BlockSpec((TS, B, D), lambda i: (i, 0, 0))
    out_shape = jax.ShapeDtypeStruct((S, B, D), x.dtype)

    cparams = pltpu.CompilerParams(
        dimension_semantics=("parallel",),            # v7x: shard S axis over 2 TCs
        vmem_limit_bytes=vmem_limit,
    )

    if not do_dropout:
        # Dropout is identity in eval mode (or p == 0).
        return pl.pallas_call(
            _pe_add_kernel,
            out_shape=out_shape,
            grid=grid,
            in_specs=[x_spec, pe_spec],
            out_specs=out_spec,
            compiler_params=cparams,
        )(x, pe)

    if float(p) >= 1.0:
        return jnp.zeros((S, B, D), dtype=x.dtype)

    # keep probability 1-p as an integer threshold: P(hash_i32 < thr) == 1 - p.
    keep_threshold = min(int(round((1.0 - float(p)) * 4294967296.0)), 4294967295)
    threshold_i32 = keep_threshold - (1 << 31)
    scale = 1.0 / (1.0 - float(p))

    seed_arr = jnp.array([seed], dtype=jnp.int32)
    kernel = functools.partial(_pe_add_dropout_kernel,
                               block_rows=TS, batch=B, d_model=D,
                               threshold_i32=threshold_i32, scale=scale)
    return pl.pallas_call(
        kernel,
        out_shape=out_shape,
        grid=grid,
        in_specs=[
            pl.BlockSpec(memory_space=pltpu.MemorySpace.SMEM),   # seed scalar
            x_spec,
            pe_spec,
        ],
        out_specs=out_spec,
        compiler_params=cparams,
    )(seed_arr, x, pe)


# ----------------------------------------------------------------------------
# Demo / self-check
# ----------------------------------------------------------------------------
if __name__ == "__main__":
    d_model, max_len = 32, 128
    pe = make_positional_encoding_table(d_model, max_len, dtype=jnp.float32)

    # --- eval path, auto tile ---
    seq_len, batch = 8, 2
    x = jax.random.normal(jax.random.PRNGKey(0), (seq_len, batch, d_model), dtype=jnp.float32)
    out = jax.block_until_ready(positional_encoding_forward(x, pe, p=0.1, training=False))
    ref = x + pe[:seq_len]
    assert out.shape == (seq_len, batch, d_model)
    assert jnp.allclose(out, ref, atol=1e-6, rtol=1e-6)

    # --- eval path, multi-step grid with a partial edge block ---
    S2 = 40
    x2 = jax.random.normal(jax.random.PRNGKey(1), (S2, batch, d_model), dtype=jnp.float32)
    out2 = jax.block_until_ready(
        positional_encoding_forward(x2, pe, p=0.1, training=False, block_rows=16))
    ref2 = x2 + pe[:S2]
    assert jnp.allclose(out2, ref2, atol=1e-6, rtol=1e-6)

    # --- training path: inverted-dropout semantics ---
    # TODO(synk): the dropout mask comes from a counter-based hash PRNG, so it
    # cannot reproduce PyTorch's RNG stream bit-for-bit (keep-probability and
    # 1/(1-p) scaling semantics match).
    p = 0.5
    out3 = jax.block_until_ready(
        positional_encoding_forward(x2, pe, p=p, training=True, seed=123, block_rows=16))
    scaled = ref2 / (1.0 - p)
    dropped = (out3 == 0)
    max_err = float(jnp.max(jnp.abs(jnp.where(dropped, 0.0, out3 - scaled))))
    assert max_err < 1e-5
    frac = float(jnp.mean(dropped.astype(jnp.float32)))
    assert 0.2 < frac < 0.8, f"dropped fraction {frac} far from p={p}"

    # --- dropout mask is independent of the tile size (counter-based hash) ---
    out3b = jax.block_until_ready(
        positional_encoding_forward(x2, pe, p=p, training=True, seed=123, block_rows=8))
    assert jnp.array_equal(out3, out3b)

    print("KERNEL_OK")
</pallas_src>

<mosaic_0001>
module attributes {stable_mosaic.version = 11 : i64} {
  func.func @_pe_add_kernel(%arg0: i32, %arg1: memref<8x2x32xf32, #tpu.memory_space<vmem>>, %arg2: memref<8x1x32xf32, #tpu.memory_space<vmem>>, %arg3: memref<8x2x32xf32, #tpu.memory_space<vmem>>) attributes {dimension_semantics = [#tpu.dimension_semantics<parallel>], iteration_bounds = array<i64: 1>, scalar_prefetch = 0 : i64, scratch_operands = 0 : i64, tpu.core_type = #tpu.core_type<tc>, window_params = [{transform_indices = @transform_0, window_bounds = array<i64: 8, 2, 32>}, {transform_indices = @transform_1, window_bounds = array<i64: 8, 1, 32>}, {transform_indices = @transform_2, window_bounds = array<i64: 8, 2, 32>}]} {
    %c0 = arith.constant 0 : index
    %c0_0 = arith.constant 0 : index
    %c0_1 = arith.constant 0 : index
    %0 = vector.load %arg1[%c0, %c0_0, %c0_1] : memref<8x2x32xf32, #tpu.memory_space<vmem>>, vector<8x2x32xf32>
    %c0_2 = arith.constant 0 : index
    %c0_3 = arith.constant 0 : index
    %c0_4 = arith.constant 0 : index
    %1 = vector.load %arg2[%c0_2, %c0_3, %c0_4] : memref<8x1x32xf32, #tpu.memory_space<vmem>>, vector<8x1x32xf32>
    %2 = vector.broadcast %1 : vector<8x1x32xf32> to vector<8x2x32xf32>
    %3 = arith.addf %0, %2 : vector<8x2x32xf32>
    %c0_5 = arith.constant 0 : index
    %c0_6 = arith.constant 0 : index
    %c0_7 = arith.constant 0 : index
    %4 = vector.load %arg3[%c0_5, %c0_6, %c0_7] : memref<8x2x32xf32, #tpu.memory_space<vmem>>, vector<8x2x32xf32>
    tpu.vector_store %arg3[%c0_5, %c0_6, %c0_7], %3 {strides = array<i32>} : memref<8x2x32xf32, #tpu.memory_space<vmem>>, vector<8x2x32xf32>,
    return
  }
  func.func @transform_0(%arg0: i32) -> (i32, i32, i32) {
    %c0_i32 = arith.constant 0 : i32
    %c0_i32_0 = arith.constant 0 : i32
    %c0_i32_1 = arith.constant 0 : i32
    return %arg0, %c0_i32, %c0_i32_0 : i32, i32, i32
  }
  func.func @transform_1(%arg0: i32) -> (i32, i32, i32) {
    %c0_i32 = arith.constant 0 : i32
    %c0_i32_0 = arith.constant 0 : i32
    %c0_i32_1 = arith.constant 0 : i32
    return %arg0, %c0_i32, %c0_i32_0 : i32, i32, i32
  }
  func.func @transform_2(%arg0: i32) -> (i32, i32, i32) {
    %c0_i32 = arith.constant 0 : i32
    %c0_i32_0 = arith.constant 0 : i32
    %c0_i32_1 = arith.constant 0 : i32
    return %arg0, %c0_i32, %c0_i32_0 : i32, i32, i32
  }
}

</mosaic_0001>

<llo_original>
// kernel: tpu_custom_call.1
$region0: #{tpu_custom_call.1}
  #allocation0 [shape = 'u32[]', space=smem, size = 0x4, offset = 0x4, fixed_abs, tag = 'smem constant byte address 0x4 - core index']
  #allocation1 [shape = 'u32[144,128]{1,0:T(1,128)}', space=vmem, size = 0x12000, scoped, tag = 'internal scratch']
  %s0 = inlined_call_operand.vmem [shape: f32[8,2,32], index: 0, kind: input, shape index: {}]
  %s1 = inlined_call_operand.vmem [shape: f32[128,1,32], index: 1, kind: input, shape index: {}]
  %s2 = inlined_call_operand.hbm [shape: f32[8,2,32], index: 2, kind: output, shape index: {}]
  %s3 = sld [smem:[#allocation0]]
  $region18: #{tpu_custom_call.1} parent=0
    _
  %s5 = ssub.s32 1, %s3
  %s6 = scalar_select 0, %s5, %s3
  $region1: #{tpu_custom_call.1} parent=0
    #allocation2 [shape = 'u8[8192]{0}', space=vmem, size = 0x2000, scoped, tag = 'output window, operand 0, single buffered']
    #allocation3 [shape = 's32[1]{0}', space=sflag, size = 0x4, scoped, tag = 'scoped memory for tpu_custom_call.1']
    %7 = vsyncpa [#allocation3], 0
    // Predicated region
    $region2: #{tpu_custom_call.1} parent=1 // pred_check
      _
    $region3: #{tpu_custom_call.1} parent=1 // pred_check_branch
      %9 = sbr.rel (0) target = $region5
    $region4: #{tpu_custom_call.1} parent=1 // pred_region
      _
    $region5: #{tpu_custom_call.1} parent=1 // pred_fallthru
      _
    // Predicated region
    $region6: #{tpu_custom_call.1} parent=1 // pred_check
      _
    $region7: #{tpu_custom_call.1} parent=1 // pred_check_branch
      %11 = sbr.rel (0) target = $region9
    $region8: #{tpu_custom_call.1} parent=1 // pred_region
      _
    $region9: #{tpu_custom_call.1} parent=1 // pred_fallthru
      _
    %v12 = vld [vmem:[%s0] sm:$0x3]
    %v13 = vld [vmem:[%s0 + $0x2] sm:$0x3]
    %v14 = vld [vmem:[%s0 + $0x4] sm:$0x3]
    %v15 = vld [vmem:[%s0 + $0x6] sm:$0x3]
    %v16 = vld [vmem:[%s0 + $0x8] sm:$0x3]
    %v17 = vld [vmem:[%s0 + $0xa] sm:$0x3]
    %v18 = vld [vmem:[%s0 + $0xc] sm:$0x3]
    %v19 = vld [vmem:[%s0 + $0xe] sm:$0x3]
    %v20 = vld [vmem:[%s1] sm:$0x1]
    %v21 = vld [vmem:[%s1 + $0x1] sm:$0x1]
    %v22 = vld [vmem:[%s1 + $0x2] sm:$0x1]
    %v23 = vld [vmem:[%s1 + $0x3] sm:$0x1]
    %v24 = vld [vmem:[%s1 + $0x4] sm:$0x1]
    %v25 = vld [vmem:[%s1 + $0x5] sm:$0x1]
    %v26 = vld [vmem:[%s1 + $0x6] sm:$0x1]
    %v27 = vld [vmem:[%s1 + $0x7] sm:$0x1]
    %v36 = vlaneseq
    %v37 = vshrl.u32 %v36, 7
    %v38 = vsub.s32 0, %v37
    %v39 = vrot.slane %v20, %v38
    %v40 = vlaneseq
    %v41 = vshrl.u32 %v40, 7
    %v42 = vsub.s32 0, %v41
    %v43 = vrot.slane %v21, %v42
    %v44 = vlaneseq
    %v45 = vshrl.u32 %v44, 7
    %v46 = vsub.s32 0, %v45
    %v47 = vrot.slane %v22, %v46
    %v48 = vlaneseq
    %v49 = vshrl.u32 %v48, 7
    %v50 = vsub.s32 0, %v49
    %v51 = vrot.slane %v23, %v50
    %v52 = vlaneseq
    %v53 = vshrl.u32 %v52, 7
    %v54 = vsub.s32 0, %v53
    %v55 = vrot.slane %v24, %v54
    %v56 = vlaneseq
    %v57 = vshrl.u32 %v56, 7
    %v58 = vsub.s32 0, %v57
    %v59 = vrot.slane %v25, %v58
    %v60 = vlaneseq
    %v61 = vshrl.u32 %v60, 7
    %v62 = vsub.s32 0, %v61
    %v63 = vrot.slane %v26, %v62
    %v64 = vlaneseq
    %v65 = vshrl.u32 %v64, 7
    %v66 = vsub.s32 0, %v65
    %v67 = vrot.slane %v27, %v66
    %v76 = vadd.f32 %v12, %v39
    %v77 = vadd.f32 %v13, %v43
    %v78 = vadd.f32 %v14, %v47
    %v79 = vadd.f32 %v15, %v51
    %v80 = vadd.f32 %v16, %v55
    %v81 = vadd.f32 %v17, %v59
    %v82 = vadd.f32 %v18, %v63
    %v83 = vadd.f32 %v19, %v67
    %vm84 = vcmask 254976
    %85 = vst.msk [vmem:[#allocation2] sm:$0x3] %vm84, %v76
    %86 = vst.msk [vmem:[#allocation2 + $0x2] sm:$0x3] %vm84, %v77
    %87 = vst.msk [vmem:[#allocation2 + $0x4] sm:$0x3] %vm84, %v78
    %88 = vst.msk [vmem:[#allocation2 + $0x6] sm:$0x3] %vm84, %v79
    %89 = vst.msk [vmem:[#allocation2 + $0x8] sm:$0x3] %vm84, %v80
    %90 = vst.msk [vmem:[#allocation2 + $0xa] sm:$0x3] %vm84, %v81
    %91 = vst.msk [vmem:[#allocation2 + $0xc] sm:$0x3] %vm84, %v82
    %92 = vst.msk [vmem:[#allocation2 + $0xe] sm:$0x3] %vm84, %v83
    // Predicated region
    $region10: #{tpu_custom_call.1} parent=1 // pred_check
      _
    $region11: #{tpu_custom_call.1} parent=1 // pred_check_branch
      %94 = sbr.rel (0) target = $region13
    $region12: #{tpu_custom_call.1} parent=1 // pred_region
      %s96 = ssub.s32 256, 256
      %97 = vsyncadd [#allocation3], %s96
      %s98 = sshll.u32 [#allocation2], 4
      %s99 = int_to_ptr.vmem [resolvable:$true] %s98
      %104 = dma.vmem_to_hbm [thread:$0]  %s99, 256, %s2, [#allocation3], 32, 32, 2
    $region13: #{tpu_custom_call.1} parent=1 // pred_fallthru
      _
    // Predicated region
    $region14: #{tpu_custom_call.1} parent=1 // pred_check
      _
    $region15: #{tpu_custom_call.1} parent=1 // pred_check_branch
      %106 = sbr.rel (0) target = $region17
    $region16: #{tpu_custom_call.1} parent=1 // pred_region
      %107 = dma.done [#allocation3], 256
    $region17: #{tpu_custom_call.1} parent=1 // pred_fallthru
      _
    %108 = vsyncpa [#allocation3], 1

</llo_original>
